<compile_context>
chip_gen: v6e
topology: v6e:2x2x1
jax: 0.10.0
libtpu: 0.0.40
codegen_flags: <defaults>
</compile_context>

<pallas_src>
import jax
import jax.numpy as jnp
import numpy as np
from jax.experimental import pallas as pl
from jax.experimental.pallas import tpu as pltpu

EPS = 1e-5                              # nn.BatchNorm1d default eps
PAD = 8                                 # max dilation used by the block (d8)
OFFSETS = (-8, -4, -2, -1, 0, 1, 2, 4, 8)


def _block_kernel(x_ref, w1_ref, b1_ref, wbig_ref, s2_ref, bias2_ref,
                  alphas_ref, o_ref, yp_ref, ys_ref):
    n = yp_ref.shape[0]
    L = x_ref.shape[2]
    x = x_ref[0]                                              # (Cin, L)

    # --- c1 (1x1 conv) with BN1 folded in, then PReLU ---------------------
    y = jnp.dot(w1_ref[...], x, preferred_element_type=jnp.float32) + b1_ref[...]
    a1 = alphas_ref[0]
    y = jnp.where(y > 0, y, a1 * y)                           # (n, L)

    # --- zero-padded copy so every dilated tap is a static lane slice -----
    # Only the 2*PAD halo columns are zeroed (cheap, redone every step so the
    # batch axis stays safely "parallel" for megacore sharding).
    yp_ref[:, 0:PAD] = jnp.zeros((n, PAD), jnp.float32)
    yp_ref[:, PAD + L:PAD + L + PAD] = jnp.zeros((n, PAD), jnp.float32)
    yp_ref[:, PAD:PAD + L] = y

    # --- stack the 9 shifted tap copies on the sublane axis ---------------
    # ys has K = 9*n rows; together with the fused weight this turns the four
    # dilated convs + add chain + concat + BN2 scale into ONE MXU matmul.
    for s, off in enumerate(OFFSETS):
        tap = y if off == 0 else yp_ref[:, PAD + off:PAD + off + L]
        ys_ref[s * n:(s + 1) * n, :] = tap

    acc = jnp.dot(wbig_ref[...], ys_ref[...],
                  preferred_element_type=jnp.float32)         # (nOut, L)

    # --- residual (scaled through BN2), BN2 bias, PReLU -------------------
    z = acc + s2_ref[...] * x + bias2_ref[...]
    a2 = alphas_ref[1]
    o_ref[0] = jnp.where(z > 0, z, a2 * z)


def fold_params(p, nIn, nOut):
    """Fold BN1 into c1, BN2 into the dilated weights / residual / bias, and
    fuse the four dilated convs + add chain + concat into W_big[nOut, 9*n]."""
    n = int(p["c1_w"].shape[0])
    n1 = nOut - 3 * n

    s1 = p["g1"] * jax.lax.rsqrt(p["v1"] + EPS)               # (n,)
    w1 = (p["c1_w"] * s1[:, None]).astype(jnp.float32)        # (n, nIn)
    b1 = (((p["c1_b"] - p["m1"]) * s1 + p["b1"])[:, None]).astype(jnp.float32)

    s2 = p["g2"] * jax.lax.rsqrt(p["v2"] + EPS)               # (nOut,)
    bias2 = ((p["b2"] - p["m2"] * s2)[:, None]).astype(jnp.float32)

    wbig = np.zeros((nOut, len(OFFSETS) * n), np.float32)
    oi = {o: i for i, o in enumerate(OFFSETS)}

    def put(w, d, row_blocks):                                # w: (cout, n, 3)
        w = np.asarray(w)
        for tap, off in ((0, -d), (1, 0), (2, d)):
            c0 = oi[off] * n
            for r0, r1 in row_blocks:
                wbig[r0:r1, c0:c0 + n] += w[:, :, tap]

    put(p["wd1"], 1, [(0, n1)])                                           # d1
    put(p["wd2"], 2, [(n1, n1 + n), (n1 + n, n1 + 2 * n), (n1 + 2 * n, nOut)])
    put(p["wd4"], 4, [(n1 + n, n1 + 2 * n), (n1 + 2 * n, nOut)])
    put(p["wd8"], 8, [(n1 + 2 * n, nOut)])
    wbig = (jnp.asarray(wbig) * s2[:, None]).astype(jnp.float32)          # BN2 scale

    alphas = jnp.asarray([p["a1"], p["a2"]], dtype=jnp.float32)           # PReLU
    return dict(w1=w1, b1=b1, wbig=wbig,
                s2=s2[:, None].astype(jnp.float32), bias2=bias2,
                alphas=alphas, n=n)


def dilated_conv_block_b(x_ncl, params):
    """x_ncl: (B, Cin, L) float32, PyTorch NCL layout. Returns (B, nOut, L)."""
    B, Cin, L = x_ncl.shape
    nOut = int(params["g2"].shape[0])
    assert Cin == nOut, "residual add path requires nIn == nOut"
    fp = fold_params(params, Cin, nOut)
    n = fp["n"]
    ktaps = len(OFFSETS) * n

    in_specs = [
        pl.BlockSpec((1, Cin, L), lambda b: (b, 0, 0)),                 # x
        pl.BlockSpec((n, Cin), lambda b: (0, 0)),                       # folded c1 W
        pl.BlockSpec((n, 1), lambda b: (0, 0)),                         # folded c1 bias
        pl.BlockSpec((nOut, ktaps), lambda b: (0, 0)),                  # fused tap W
        pl.BlockSpec((nOut, 1), lambda b: (0, 0)),                      # BN2 scale
        pl.BlockSpec((nOut, 1), lambda b: (0, 0)),                      # BN2 bias
        pl.BlockSpec(memory_space=pltpu.MemorySpace.SMEM),              # PReLU alphas
    ]

    out = pl.pallas_call(
        _block_kernel,
        out_shape=jax.ShapeDtypeStruct((B, nOut, L), jnp.float32),
        grid_spec=pltpu.PrefetchScalarGridSpec(
            num_scalar_prefetch=0,
            grid=(B,),
            in_specs=in_specs,
            out_specs=pl.BlockSpec((1, nOut, L), lambda b: (b, 0, 0)),
            scratch_shapes=[
                pltpu.VMEM((n, L + 2 * PAD), jnp.float32),              # padded y
                pltpu.VMEM((ktaps, L), jnp.float32),                    # stacked taps
            ],
        ),
        compiler_params=pltpu.CompilerParams(
            dimension_semantics=("parallel",)),                          # megacore
    )(x_ncl, fp["w1"], fp["b1"], fp["wbig"], fp["s2"], fp["bias2"], fp["alphas"])
    return out


def ref_forward(x_ncl, p):
    """Pure-JAX reference (inference-mode BN) on the raw/unfolded parameters."""
    x = jnp.transpose(x_ncl, (0, 2, 1))                       # (B, L, Cin)
    L = x.shape[1]
    y = x @ p["c1_w"].T + p["c1_b"]                           # (B, L, n)
    y = (y - p["m1"]) * jax.lax.rsqrt(p["v1"] + EPS) * p["g1"] + p["b1"]
    y = jnp.where(y > 0, y, p["a1"] * y)

    def dconv(w, d):                                          # w: (cout, n, 3)
        yp = jnp.pad(y, ((0, 0), (d, d), (0, 0)))
        return (yp[:, 0:L] @ w[:, :, 0].T
                + y @ w[:, :, 1].T
                + yp[:, 2 * d:2 * d + L] @ w[:, :, 2].T)

    d1 = dconv(p["wd1"], 1)
    d2 = dconv(p["wd2"], 2)
    d4 = dconv(p["wd4"], 4)
    d8 = dconv(p["wd8"], 8)
    combine = jnp.concatenate([d1, d2, d2 + d4, d2 + d4 + d8], axis=-1) + x
    z = (combine - p["m2"]) * jax.lax.rsqrt(p["v2"] + EPS) * p["g2"] + p["b2"]
    z = jnp.where(z > 0, z, p["a2"] * z)
    return jnp.transpose(z, (0, 2, 1))


def init_params(key, nIn, nOut):
    n = nOut // 4
    n1 = nOut - 3 * n
    ks = jax.random.split(key, 14)

    def w(k, shape, scale=0.1):
        return (scale * jax.random.normal(k, shape)).astype(jnp.float32)

    return {
        # Conv1d(nIn, n, 1): weight (n, nIn, 1) stored with k squeezed; bias (n,)
        "c1_w": w(ks[0], (n, nIn)),
        "c1_b": w(ks[1], (n,)),
        # BatchNorm1d(n) inference params + PReLU alpha
        "g1": (1.0 + 0.1 * jax.random.normal(ks[2], (n,))).astype(jnp.float32),
        "b1": w(ks[3], (n,)),
        "m1": w(ks[4], (n,)),
        "v1": (0.5 + jnp.abs(jax.random.normal(ks[5], (n,)))).astype(jnp.float32),
        "a1": 0.25,
        # DilatedConv weights in PyTorch layout (Cout, Cin, 3), no bias
        "wd1": w(ks[6], (n1, n, 3)),
        "wd2": w(ks[7], (n, n, 3)),
        "wd4": w(ks[8], (n, n, 3)),
        "wd8": w(ks[9], (n, n, 3)),
        # BatchNorm1d(nOut) inference params + PReLU alpha
        "g2": (1.0 + 0.1 * jax.random.normal(ks[10], (nOut,))).astype(jnp.float32),
        "b2": w(ks[11], (nOut,)),
        "m2": w(ks[12], (nOut,)),
        "v2": (0.5 + jnp.abs(jax.random.normal(ks[13], (nOut,)))).astype(jnp.float32),
        "a2": 0.25,
    }


if __name__ == "__main__":
    B, nIn, nOut, L = 2, 16, 16, 128   # nIn == nOut -> residual add enabled
    key = jax.random.PRNGKey(0)
    kx, kp = jax.random.split(key)
    x = jax.random.normal(kx, (B, nIn, L), jnp.float32)        # NCL like PyTorch
    params = init_params(kp, nIn, nOut)

    out = jax.block_until_ready(dilated_conv_block_b(x, params))
    ref = jax.block_until_ready(ref_forward(x, params))
    np.testing.assert_allclose(np.asarray(out), np.asarray(ref), atol=1e-4, rtol=1e-4)
    assert out.shape == (B, nOut, L)
    print("KERNEL_OK")
</pallas_src>

<mosaic_0001>
module attributes {stable_mosaic.version = 11 : i64} {
  func.func @_block_kernel(%arg0: i32, %arg1: memref<1x16x128xf32, #tpu.memory_space<vmem>>, %arg2: memref<4x16xf32, #tpu.memory_space<vmem>>, %arg3: memref<4x1xf32, #tpu.memory_space<vmem>>, %arg4: memref<16x36xf32, #tpu.memory_space<vmem>>, %arg5: memref<16x1xf32, #tpu.memory_space<vmem>>, %arg6: memref<16x1xf32, #tpu.memory_space<vmem>>, %arg7: memref<2xf32, #tpu.memory_space<smem>>, %arg8: memref<1x16x128xf32, #tpu.memory_space<vmem>>, %arg9: memref<4x144xf32, #tpu.memory_space<vmem>>, %arg10: memref<36x128xf32, #tpu.memory_space<vmem>>) attributes {dimension_semantics = [#tpu.dimension_semantics<parallel>], iteration_bounds = array<i64: 2>, scalar_prefetch = 0 : i64, scratch_operands = 2 : i64, tpu.core_type = #tpu.core_type<tc>, window_params = [{transform_indices = @transform_0, window_bounds = array<i64: 1, 16, 128>}, {pipeline_mode = #tpu.pipeline_mode<synchronous>, transform_indices = @transform_1, window_bounds = array<i64: 4, 16>}, {pipeline_mode = #tpu.pipeline_mode<synchronous>, transform_indices = @transform_2, window_bounds = array<i64: 4, 1>}, {pipeline_mode = #tpu.pipeline_mode<synchronous>, transform_indices = @transform_3, window_bounds = array<i64: 16, 36>}, {pipeline_mode = #tpu.pipeline_mode<synchronous>, transform_indices = @transform_4, window_bounds = array<i64: 16, 1>}, {pipeline_mode = #tpu.pipeline_mode<synchronous>, transform_indices = @transform_5, window_bounds = array<i64: 16, 1>}, {transform_indices = @transform_6, window_bounds = array<i64: 2>}, {transform_indices = @transform_7, window_bounds = array<i64: 1, 16, 128>}]} {
    %c0 = arith.constant 0 : index
    %c0_0 = arith.constant 0 : index
    %c0_1 = arith.constant 0 : index
    %0 = vector.load %arg1[%c0, %c0_0, %c0_1] : memref<1x16x128xf32, #tpu.memory_space<vmem>>, vector<1x16x128xf32>
    %1 = vector.shape_cast %0 : vector<1x16x128xf32> to vector<16x128xf32>
    %c0_2 = arith.constant 0 : index
    %c0_3 = arith.constant 0 : index
    %2 = vector.load %arg2[%c0_2, %c0_3] : memref<4x16xf32, #tpu.memory_space<vmem>>, vector<4x16xf32>
    %cst = arith.constant dense<0.000000e+00> : vector<4x128xf32>
    %3 = tpu.matmul %2, %1, %cst {dimension_numbers = #tpu.dot_dimension_numbers<[1], [0], [0], [1], [0, 0, 1, 1], [], []>} : vector<4x16xf32>, vector<16x128xf32>, vector<4x128xf32> -> vector<4x128xf32>
    %c0_4 = arith.constant 0 : index
    %c0_5 = arith.constant 0 : index
    %4 = vector.load %arg3[%c0_4, %c0_5] : memref<4x1xf32, #tpu.memory_space<vmem>>, vector<4x1xf32>
    %5 = vector.broadcast %4 : vector<4x1xf32> to vector<4x128xf32>
    %6 = arith.addf %3, %5 : vector<4x128xf32>
    %c0_6 = arith.constant 0 : index
    %7 = memref.load %arg7[%c0_6] : memref<2xf32, #tpu.memory_space<smem>>
    %cst_7 = arith.constant 0.000000e+00 : f32
    %8 = vector.broadcast %cst_7 : f32 to vector<4x128xf32>
    %9 = arith.cmpf ogt, %6, %8 : vector<4x128xf32>
    %10 = vector.broadcast %7 : f32 to vector<4x128xf32>
    %11 = arith.mulf %10, %6 : vector<4x128xf32>
    %12 = arith.select %9, %6, %11 : vector<4x128xi1>, vector<4x128xf32>
    %cst_8 = arith.constant 0.000000e+00 : f32
    %13 = vector.broadcast %cst_8 : f32 to vector<4x8xf32>
    %c0_9 = arith.constant 0 : index
    %c0_10 = arith.constant 0 : index
    %14 = vector.load %arg9[%c0_9, %c0_10] : memref<4x144xf32, #tpu.memory_space<vmem>>, vector<4x8xf32>
    tpu.vector_store %arg9[%c0_9, %c0_10], %13 {strides = array<i32>} : memref<4x144xf32, #tpu.memory_space<vmem>>, vector<4x8xf32>,
    %cst_11 = arith.constant 0.000000e+00 : f32
    %15 = vector.broadcast %cst_11 : f32 to vector<4x8xf32>
    %c0_12 = arith.constant 0 : index
    %c136 = arith.constant 136 : index
    %16 = vector.load %arg9[%c0_12, %c136] : memref<4x144xf32, #tpu.memory_space<vmem>>, vector<4x8xf32>
    tpu.vector_store %arg9[%c0_12, %c136], %15 {strides = array<i32>} : memref<4x144xf32, #tpu.memory_space<vmem>>, vector<4x8xf32>,
    %c0_13 = arith.constant 0 : index
    %c8 = arith.constant 8 : index
    %17 = vector.load %arg9[%c0_13, %c8] : memref<4x144xf32, #tpu.memory_space<vmem>>, vector<4x128xf32>
    tpu.vector_store %arg9[%c0_13, %c8], %12 {strides = array<i32>} : memref<4x144xf32, #tpu.memory_space<vmem>>, vector<4x128xf32>,
    %c0_14 = arith.constant 0 : index
    %c0_15 = arith.constant 0 : index
    %18 = vector.load %arg9[%c0_14, %c0_15] : memref<4x144xf32, #tpu.memory_space<vmem>>, vector<4x128xf32>
    %c0_16 = arith.constant 0 : index
    %c0_17 = arith.constant 0 : index
    %19 = vector.load %arg10[%c0_16, %c0_17] : memref<36x128xf32, #tpu.memory_space<vmem>>, vector<4x128xf32>
    tpu.vector_store %arg10[%c0_16, %c0_17], %18 {strides = array<i32>} : memref<36x128xf32, #tpu.memory_space<vmem>>, vector<4x128xf32>,
    %c0_18 = arith.constant 0 : index
    %c4 = arith.constant 4 : index
    %20 = vector.load %arg9[%c0_18, %c4] : memref<4x144xf32, #tpu.memory_space<vmem>>, vector<4x128xf32>
    %c4_19 = arith.constant 4 : index
    %c0_20 = arith.constant 0 : index
    %21 = vector.load %arg10[%c4_19, %c0_20] : memref<36x128xf32, #tpu.memory_space<vmem>>, vector<4x128xf32>
    tpu.vector_store %arg10[%c4_19, %c0_20], %20 {strides = array<i32>} : memref<36x128xf32, #tpu.memory_space<vmem>>, vector<4x128xf32>,
    %c0_21 = arith.constant 0 : index
    %c6 = arith.constant 6 : index
    %22 = vector.load %arg9[%c0_21, %c6] : memref<4x144xf32, #tpu.memory_space<vmem>>, vector<4x128xf32>
    %c8_22 = arith.constant 8 : index
    %c0_23 = arith.constant 0 : index
    %23 = vector.load %arg10[%c8_22, %c0_23] : memref<36x128xf32, #tpu.memory_space<vmem>>, vector<4x128xf32>
    tpu.vector_store %arg10[%c8_22, %c0_23], %22 {strides = array<i32>} : memref<36x128xf32, #tpu.memory_space<vmem>>, vector<4x128xf32>,
    %c0_24 = arith.constant 0 : index
    %c7 = arith.constant 7 : index
    %24 = vector.load %arg9[%c0_24, %c7] : memref<4x144xf32, #tpu.memory_space<vmem>>, vector<4x128xf32>
    %c12 = arith.constant 12 : index
    %c0_25 = arith.constant 0 : index
    %25 = vector.load %arg10[%c12, %c0_25] : memref<36x128xf32, #tpu.memory_space<vmem>>, vector<4x128xf32>
    tpu.vector_store %arg10[%c12, %c0_25], %24 {strides = array<i32>} : memref<36x128xf32, #tpu.memory_space<vmem>>, vector<4x128xf32>,
    %c16 = arith.constant 16 : index
    %c0_26 = arith.constant 0 : index
    %26 = vector.load %arg10[%c16, %c0_26] : memref<36x128xf32, #tpu.memory_space<vmem>>, vector<4x128xf32>
    tpu.vector_store %arg10[%c16, %c0_26], %12 {strides = array<i32>} : memref<36x128xf32, #tpu.memory_space<vmem>>, vector<4x128xf32>,
    %c0_27 = arith.constant 0 : index
    %c9 = arith.constant 9 : index
    %27 = vector.load %arg9[%c0_27, %c9] : memref<4x144xf32, #tpu.memory_space<vmem>>, vector<4x128xf32>
    %c20 = arith.constant 20 : index
    %c0_28 = arith.constant 0 : index
    %28 = vector.load %arg10[%c20, %c0_28] : memref<36x128xf32, #tpu.memory_space<vmem>>, vector<4x128xf32>
    tpu.vector_store %arg10[%c20, %c0_28], %27 {strides = array<i32>} : memref<36x128xf32, #tpu.memory_space<vmem>>, vector<4x128xf32>,
    %c0_29 = arith.constant 0 : index
    %c10 = arith.constant 10 : index
    %29 = vector.load %arg9[%c0_29, %c10] : memref<4x144xf32, #tpu.memory_space<vmem>>, vector<4x128xf32>
    %c24 = arith.constant 24 : index
    %c0_30 = arith.constant 0 : index
    %30 = vector.load %arg10[%c24, %c0_30] : memref<36x128xf32, #tpu.memory_space<vmem>>, vector<4x128xf32>
    tpu.vector_store %arg10[%c24, %c0_30], %29 {strides = array<i32>} : memref<36x128xf32, #tpu.memory_space<vmem>>, vector<4x128xf32>,
    %c0_31 = arith.constant 0 : index
    %c12_32 = arith.constant 12 : index
    %31 = vector.load %arg9[%c0_31, %c12_32] : memref<4x144xf32, #tpu.memory_space<vmem>>, vector<4x128xf32>
    %c28 = arith.constant 28 : index
    %c0_33 = arith.constant 0 : index
    %32 = vector.load %arg10[%c28, %c0_33] : memref<36x128xf32, #tpu.memory_space<vmem>>, vector<4x128xf32>
    tpu.vector_store %arg10[%c28, %c0_33], %31 {strides = array<i32>} : memref<36x128xf32, #tpu.memory_space<vmem>>, vector<4x128xf32>,
    %c0_34 = arith.constant 0 : index
    %c16_35 = arith.constant 16 : index
    %33 = vector.load %arg9[%c0_34, %c16_35] : memref<4x144xf32, #tpu.memory_space<vmem>>, vector<4x128xf32>
    %c32 = arith.constant 32 : index
    %c0_36 = arith.constant 0 : index
    %34 = vector.load %arg10[%c32, %c0_36] : memref<36x128xf32, #tpu.memory_space<vmem>>, vector<4x128xf32>
    tpu.vector_store %arg10[%c32, %c0_36], %33 {strides = array<i32>} : memref<36x128xf32, #tpu.memory_space<vmem>>, vector<4x128xf32>,
    %c0_37 = arith.constant 0 : index
    %c0_38 = arith.constant 0 : index
    %35 = vector.load %arg4[%c0_37, %c0_38] : memref<16x36xf32, #tpu.memory_space<vmem>>, vector<16x36xf32>
    %c0_39 = arith.constant 0 : index
    %c0_40 = arith.constant 0 : index
    %36 = vector.load %arg10[%c0_39, %c0_40] : memref<36x128xf32, #tpu.memory_space<vmem>>, vector<36x128xf32>
    %cst_41 = arith.constant dense<0.000000e+00> : vector<16x128xf32>
    %37 = tpu.matmul %35, %36, %cst_41 {dimension_numbers = #tpu.dot_dimension_numbers<[1], [0], [0], [1], [0, 0, 1, 1], [], []>} : vector<16x36xf32>, vector<36x128xf32>, vector<16x128xf32> -> vector<16x128xf32>
    %c0_42 = arith.constant 0 : index
    %c0_43 = arith.constant 0 : index
    %38 = vector.load %arg5[%c0_42, %c0_43] : memref<16x1xf32, #tpu.memory_space<vmem>>, vector<16x1xf32>
    %39 = vector.broadcast %38 : vector<16x1xf32> to vector<16x128xf32>
    %40 = arith.mulf %39, %1 : vector<16x128xf32>
    %41 = arith.addf %37, %40 : vector<16x128xf32>
    %c0_44 = arith.constant 0 : index
    %c0_45 = arith.constant 0 : index
    %42 = vector.load %arg6[%c0_44, %c0_45] : memref<16x1xf32, #tpu.memory_space<vmem>>, vector<16x1xf32>
    %43 = vector.broadcast %42 : vector<16x1xf32> to vector<16x128xf32>
    %44 = arith.addf %41, %43 : vector<16x128xf32>
    %c1 = arith.constant 1 : index
    %45 = memref.load %arg7[%c1] : memref<2xf32, #tpu.memory_space<smem>>
    %cst_46 = arith.constant 0.000000e+00 : f32
    %46 = vector.broadcast %cst_46 : f32 to vector<16x128xf32>
    %47 = arith.cmpf ogt, %44, %46 : vector<16x128xf32>
    %48 = vector.broadcast %45 : f32 to vector<16x128xf32>
    %49 = arith.mulf %48, %44 : vector<16x128xf32>
    %50 = arith.select %47, %44, %49 : vector<16x128xi1>, vector<16x128xf32>
    %c0_47 = arith.constant 0 : index
    %c0_48 = arith.constant 0 : index
    %c0_49 = arith.constant 0 : index
    %51 = vector.load %arg8[%c0_47, %c0_48, %c0_49] : memref<1x16x128xf32, #tpu.memory_space<vmem>>, vector<1x16x128xf32>
    %52 = vector.shape_cast %51 : vector<1x16x128xf32> to vector<16x128xf32>
    %53 = vector.shape_cast %50 : vector<16x128xf32> to vector<1x16x128xf32>
    tpu.vector_store %arg8[%c0_47, %c0_48, %c0_49], %53 {strides = array<i32>} : memref<1x16x128xf32, #tpu.memory_space<vmem>>, vector<1x16x128xf32>,
    return
  }
  func.func @transform_0(%arg0: i32) -> (i32, i32, i32) {
    %c0_i32 = arith.constant 0 : i32
    %c0_i32_0 = arith.constant 0 : i32
    %c0_i32_1 = arith.constant 0 : i32
    return %arg0, %c0_i32, %c0_i32_0 : i32, i32, i32
  }
  func.func @transform_1(%arg0: i32) -> (i32, i32) {
    %c0_i32 = arith.constant 0 : i32
    %c0_i32_0 = arith.constant 0 : i32
    %c0_i32_1 = arith.constant 0 : i32
    return %c0_i32, %c0_i32_0 : i32, i32
  }
  func.func @transform_2(%arg0: i32) -> (i32, i32) {
    %c0_i32 = arith.constant 0 : i32
    %c0_i32_0 = arith.constant 0 : i32
    %c0_i32_1 = arith.constant 0 : i32
    return %c0_i32, %c0_i32_0 : i32, i32
  }
  func.func @transform_3(%arg0: i32) -> (i32, i32) {
    %c0_i32 = arith.constant 0 : i32
    %c0_i32_0 = arith.constant 0 : i32
    %c0_i32_1 = arith.constant 0 : i32
    return %c0_i32, %c0_i32_0 : i32, i32
  }
  func.func @transform_4(%arg0: i32) -> (i32, i32) {
    %c0_i32 = arith.constant 0 : i32
    %c0_i32_0 = arith.constant 0 : i32
    %c0_i32_1 = arith.constant 0 : i32
    return %c0_i32, %c0_i32_0 : i32, i32
  }
  func.func @transform_5(%arg0: i32) -> (i32, i32) {
    %c0_i32 = arith.constant 0 : i32
    %c0_i32_0 = arith.constant 0 : i32
    %c0_i32_1 = arith.constant 0 : i32
    return %c0_i32, %c0_i32_0 : i32, i32
  }
  func.func @transform_6(%arg0: i32) -> i32 {
    %c0_i32 = arith.constant 0 : i32
    %c0_i32_0 = arith.constant 0 : i32
    return %c0_i32 : i32
  }
  func.func @transform_7(%arg0: i32) -> (i32, i32, i32) {
    %c0_i32 = arith.constant 0 : i32
    %c0_i32_0 = arith.constant 0 : i32
    %c0_i32_1 = arith.constant 0 : i32
    return %arg0, %c0_i32, %c0_i32_0 : i32, i32, i32
  }
}

</mosaic_0001>

<llo_original>
// kernel: tpu_custom_call.1
$region0: #{tpu_custom_call.1}
  #allocation0 [shape = 'u32[]', space=smem, size = 0x4, offset = 0x4, fixed_abs, tag = 'smem constant byte address 0x4 - core index']
  #allocation1 [shape = 'u32[144,128]{1,0:T(1,128)}', space=vmem, size = 0x12000, scoped, tag = 'internal scratch']
  #allocation2 [shape = 'f32[4,144]{1,0:T(4,128)}', space=vmem, size = 0x1000, scoped, tag = 'scratch operand']
  #allocation3 [shape = 'f32[36,128]{1,0:T(8,128)}', space=vmem, size = 0x5000, scoped, tag = 'scratch operand']
  %s0 = inlined_call_operand.vmem [shape: f32[2,16,128], index: 0, kind: input, shape index: {}]
  %s1 = inlined_call_operand.vmem [shape: f32[4,16], index: 1, kind: input, shape index: {}]
  %s2 = inlined_call_operand.vmem [shape: f32[4,1], index: 2, kind: input, shape index: {}]
  %s3 = inlined_call_operand.hbm [shape: f32[16,36], index: 3, kind: input, shape index: {}]
  %s4 = inlined_call_operand.vmem [shape: f32[16,1], index: 4, kind: input, shape index: {}]
  %s5 = inlined_call_operand.vmem [shape: f32[16,1], index: 5, kind: input, shape index: {}]
  %s6 = inlined_call_operand.vmem [shape: f32[2], index: 6, kind: input, shape index: {}]
  %s7 = inlined_call_operand.hbm [shape: f32[2,16,128], index: 7, kind: output, shape index: {}]
  %s8 = sld [smem:[#allocation0]]
  $region69: #{tpu_custom_call.1} parent=0
    _
  %s10 = ssub.s32 1, %s8
  %s11 = scalar_select 0, %s10, %s8
  $region1: #{tpu_custom_call.1} parent=0
    #allocation4 [shape = 'u8[8192]{0}', space=vmem, size = 0x2000, scoped, tag = 'input window, operand 3, single buffered']
    #allocation5 [shape = 's32[2]{0}', space=sflag, size = 0x8, scoped, tag = 'scoped memory for tpu_custom_call.1']
    #allocation6 [shape = 's32[2]{0}', space=sflag, size = 0x8, scoped, tag = 'scoped memory for tpu_custom_call.1']
    #allocation7 [shape = 's32[2]{0}', space=sflag, size = 0x8, scoped, tag = 'scoped memory for tpu_custom_call.1']
    #allocation8 [shape = 'u8[512]{0}', space=smem, size = 0x200, scoped, tag = 'input window, operand 6, single buffered']
    #allocation9 [shape = 'u8[16384]{0}', space=vmem, size = 0x4000, scoped, tag = 'output window, operand 0']
    %12 = vsyncpa [#allocation5], 0
    %13 = vsyncpa [#allocation7], 0
    %14 = vsyncpa [#allocation6], 0
    %s15 = scalar_lea.sflag [#allocation6], 1
    %16 = vsyncpa %s15, 0
    loop: start=0, step=1, limit=4
    $region2: #{tpu_custom_call.1} parent=1 // loop_pre_header
      _
    $region3: #{tpu_custom_call.1} parent=1 // loop_header
      %s18 = sphi 0, %s22
      %p19 = scmp.ge.s32.totalorder %s18, 4
      %s28 = sphi 0, %s30
      %s31 = sphi 0, %s28
      %s32 = sphi 0, %s31
      %s48 = sphi 0, %s32
      %s52 = sphi 0, %s52
      %s54 = sphi 0, %s52
      %s55 = sphi 0, %s54
      %s69 = sphi 0, %s55
      %s73 = sphi 0, %s73
      %s75 = sphi 0, %s73
      %s76 = sphi 0, %s75
      %s90 = sphi 0, %s76
      %s94 = sphi 0, %s94
      %s96 = sphi 0, %s94
      %s97 = sphi 0, %s96
      %s111 = sphi 0, %s97
      %s115 = sphi 0, %s115
      %s117 = sphi 0, %s115
      %s118 = sphi 0, %s117
      %s132 = sphi 0, %s118
      %s136 = sphi 0, %s136
      %s138 = sphi 0, %s136
      %s139 = sphi 0, %s138
      %s153 = sphi 0, %s139
      %s157 = sphi 0, %s157
      %s159 = sphi 0, %s157
      %s160 = sphi 0, %s159
      %s174 = sphi 0, %s160
      %s180 = sphi 0, %s182
      %s183 = sphi 0, %s180
      %s184 = sphi 0, %s183
      %s200 = sphi 0, %s184
    $region4: #{tpu_custom_call.1} parent=1 // loop_header_branch
      %21 = sbr.rel (%p19) target = $region8
    $region5: #{tpu_custom_call.1} parent=1 // loop_body
      %s23 = ssub.s32 %s18, 1
      %s24 = ssub.s32 %s18, 2
      %s25 = sadd.s32 %s18, 1
      %s26 = ssub.s32 %s18, %s25
      %p27 = scmp.eq.s32.totalorder %s26, 0
      %s29 = sadd.s32 %s28, 1
      %s30 = scalar_select %p27, %s28, %s29
      %p33 = pneg %p27
      %p34 = scmp.eq.s32.totalorder %s18, 1
      %p35 = por %p33, %p34
      %p36 = scmp.ne.s32.totalorder %s28, %s31
      %p37 = scmp.eq.s32.totalorder %s18, 0
      %p38 = por %p36, %p37
      %p39 = scmp.ne.s32.totalorder %s28, %s31
      %p40 = scmp.eq.s32.totalorder %s23, 1
      %p41 = por %p39, %p40
      %p42 = scmp.ne.s32.totalorder %s31, %s32
      %p43 = scmp.eq.s32.totalorder %s23, 0
      %p44 = por %p42, %p43
      %p45 = scmp.ne.s32.totalorder %s31, %s32
      %p46 = scmp.eq.s32.totalorder %s24, 1
      %p47 = por %p45, %p46
      %p49 = scmp.ne.s32.totalorder %s32, %s48
      %p50 = scmp.eq.s32.totalorder %s24, 0
      %p51 = por %p49, %p50
      %s53 = sadd.s32 %s52, 1
      %p56 = scmp.eq.s32.totalorder %s18, 1
      %p57 = scmp.ne.s32.totalorder %s52, %s54
      %p58 = scmp.eq.s32.totalorder %s18, 0
      %p59 = por %p57, %p58
      %p60 = scmp.ne.s32.totalorder %s52, %s54
      %p61 = scmp.eq.s32.totalorder %s23, 1
      %p62 = por %p60, %p61
      %p63 = scmp.ne.s32.totalorder %s54, %s55
      %p64 = scmp.eq.s32.totalorder %s23, 0
      %p65 = por %p63, %p64
      %p66 = scmp.ne.s32.totalorder %s54, %s55
      %p67 = scmp.eq.s32.totalorder %s24, 1
      %p68 = por %p66, %p67
      %p70 = scmp.ne.s32.totalorder %s55, %s69
      %p71 = scmp.eq.s32.totalorder %s24, 0
      %p72 = por %p70, %p71
      %s74 = sadd.s32 %s73, 1
      %p77 = scmp.eq.s32.totalorder %s18, 1
      %p78 = scmp.ne.s32.totalorder %s73, %s75
      %p79 = scmp.eq.s32.totalorder %s18, 0
      %p80 = por %p78, %p79
      %p81 = scmp.ne.s32.totalorder %s73, %s75
      %p82 = scmp.eq.s32.totalorder %s23, 1
      %p83 = por %p81, %p82
      %p84 = scmp.ne.s32.totalorder %s75, %s76
      %p85 = scmp.eq.s32.totalorder %s23, 0
      %p86 = por %p84, %p85
      %p87 = scmp.ne.s32.totalorder %s75, %s76
      %p88 = scmp.eq.s32.totalorder %s24, 1
      %p89 = por %p87, %p88
      %p91 = scmp.ne.s32.totalorder %s76, %s90
      %p92 = scmp.eq.s32.totalorder %s24, 0
      %p93 = por %p91, %p92
      %s95 = sadd.s32 %s94, 1
      %p98 = scmp.eq.s32.totalorder %s18, 1
      %p99 = scmp.ne.s32.totalorder %s94, %s96
      %p100 = scmp.eq.s32.totalorder %s18, 0
      %p101 = por %p99, %p100
      %p102 = scmp.ne.s32.totalorder %s94, %s96
      %p103 = scmp.eq.s32.totalorder %s23, 1
      %p104 = por %p102, %p103
      %p105 = scmp.ne.s32.totalorder %s96, %s97
      %p106 = scmp.eq.s32.totalorder %s23, 0
      %p107 = por %p105, %p106
      %p108 = scmp.ne.s32.totalorder %s96, %s97
      %p109 = scmp.eq.s32.totalorder %s24, 1
      %p110 = por %p108, %p109
      %p112 = scmp.ne.s32.totalorder %s97, %s111
      %p113 = scmp.eq.s32.totalorder %s24, 0
      %p114 = por %p112, %p113
      %s116 = sadd.s32 %s115, 1
      %p119 = scmp.eq.s32.totalorder %s18, 1
      %p120 = scmp.ne.s32.totalorder %s115, %s117
      %p121 = scmp.eq.s32.totalorder %s18, 0
      %p122 = por %p120, %p121
      %p123 = scmp.ne.s32.totalorder %s115, %s117
      %p124 = scmp.eq.s32.totalorder %s23, 1
      %p125 = por %p123, %p124
      %p126 = scmp.ne.s32.totalorder %s117, %s118
      %p127 = scmp.eq.s32.totalorder %s23, 0
      %p128 = por %p126, %p127
      %p129 = scmp.ne.s32.totalorder %s117, %s118
      %p130 = scmp.eq.s32.totalorder %s24, 1
      %p131 = por %p129, %p130
      %p133 = scmp.ne.s32.totalorder %s118, %s132
      %p134 = scmp.eq.s32.totalorder %s24, 0
      %p135 = por %p133, %p134
      %s137 = sadd.s32 %s136, 1
      %p140 = scmp.eq.s32.totalorder %s18, 1
      %p141 = scmp.ne.s32.totalorder %s136, %s138
      %p142 = scmp.eq.s32.totalorder %s18, 0
      %p143 = por %p141, %p142
      %p144 = scmp.ne.s32.totalorder %s136, %s138
      %p145 = scmp.eq.s32.totalorder %s23, 1
      %p146 = por %p144, %p145
      %p147 = scmp.ne.s32.totalorder %s138, %s139
      %p148 = scmp.eq.s32.totalorder %s23, 0
      %p149 = por %p147, %p148
      %p150 = scmp.ne.s32.totalorder %s138, %s139
      %p151 = scmp.eq.s32.totalorder %s24, 1
      %p152 = por %p150, %p151
      %p154 = scmp.ne.s32.totalorder %s139, %s153
      %p155 = scmp.eq.s32.totalorder %s24, 0
      %p156 = por %p154, %p155
      %s158 = sadd.s32 %s157, 1
      %p161 = scmp.eq.s32.totalorder %s18, 1
      %p162 = scmp.ne.s32.totalorder %s157, %s159
      %p163 = scmp.eq.s32.totalorder %s18, 0
      %p164 = por %p162, %p163
      %p165 = scmp.ne.s32.totalorder %s157, %s159
      %p166 = scmp.eq.s32.totalorder %s23, 1
      %p167 = por %p165, %p166
      %p168 = scmp.ne.s32.totalorder %s159, %s160
      %p169 = scmp.eq.s32.totalorder %s23, 0
      %p170 = por %p168, %p169
      %p171 = scmp.ne.s32.totalorder %s159, %s160
      %p172 = scmp.eq.s32.totalorder %s24, 1
      %p173 = por %p171, %p172
      %p175 = scmp.ne.s32.totalorder %s160, %s174
      %p176 = scmp.eq.s32.totalorder %s24, 0
      %p177 = por %p175, %p176
      %s178 = ssub.s32 %s18, %s25
      %p179 = scmp.eq.s32.totalorder %s178, 0
      %s181 = sadd.s32 %s180, 1
      %s182 = scalar_select %p179, %s180, %s181
      %p185 = pneg %p179
      %p186 = scmp.eq.s32.totalorder %s18, 1
      %p187 = por %p185, %p186
      %p188 = scmp.ne.s32.totalorder %s180, %s183
      %p189 = scmp.eq.s32.totalorder %s18, 0
      %p190 = por %p188, %p189
      %p191 = scmp.ne.s32.totalorder %s180, %s183
      %p192 = scmp.eq.s32.totalorder %s23, 1
      %p193 = por %p191, %p192
      %p194 = scmp.ne.s32.totalorder %s183, %s184
      %p195 = scmp.eq.s32.totalorder %s23, 0
      %p196 = por %p194, %p195
      %p197 = scmp.ne.s32.totalorder %s183, %s184
      %p198 = scmp.eq.s32.totalorder %s24, 1
      %p199 = por %p197, %p198
      %p201 = scmp.ne.s32.totalorder %s184, %s200
      %p202 = scmp.eq.s32.totalorder %s24, 0
      %p203 = por %p201, %p202
      %p204 = scmp.le.s32.totalorder 1, %s18
      %p205 = scmp.lt.s32.totalorder %s18, 3
      %p206 = pnand %p204, %p205
      %p207 = pneg %p206
      // Predicated region
      $region9: #{tpu_custom_call.1} parent=5 // pred_check
        _
      $region10: #{tpu_custom_call.1} parent=5 // pred_check_branch
        %209 = sbr.rel (%p206) target = $region12
      $region11: #{tpu_custom_call.1} parent=5 // pred_region
        %s210 = ssub.s32 %s18, 1
        // Predicated region
        $region13: #{tpu_custom_call.1} parent=11 // pred_check
          %p211 = pneg %p65
        $region14: #{tpu_custom_call.1} parent=11 // pred_check_branch
          %213 = sbr.rel (%p211) target = $region16
        $region15: #{tpu_custom_call.1} parent=11 // pred_region
          _
        $region16: #{tpu_custom_call.1} parent=11 // pred_fallthru
          _
        // Predicated region
        $region17: #{tpu_custom_call.1} parent=11 // pred_check
          %p214 = pneg %p86
        $region18: #{tpu_custom_call.1} parent=11 // pred_check_branch
          %216 = sbr.rel (%p214) target = $region20
        $region19: #{tpu_custom_call.1} parent=11 // pred_region
          _
        $region20: #{tpu_custom_call.1} parent=11 // pred_fallthru
          _
        // Predicated region
        $region21: #{tpu_custom_call.1} parent=11 // pred_check
          %p217 = pneg %p107
        $region22: #{tpu_custom_call.1} parent=11 // pred_check_branch
          %219 = sbr.rel (%p217) target = $region24
        $region23: #{tpu_custom_call.1} parent=11 // pred_region
          %s221 = ssub.s32 256, 256
          %222 = vsyncadd [#allocation5], %s221
          %s223 = sshll.u32 [#allocation4], 4
          %s224 = int_to_ptr.vmem [resolvable:$true] %s223
          %229 = dma.hbm_to_vmem [thread:$0]  %s3, 256, %s224, [#allocation5], 128, 128, 8
        $region24: #{tpu_custom_call.1} parent=11 // pred_fallthru
          _
        // Predicated region
        $region25: #{tpu_custom_call.1} parent=11 // pred_check
          %p230 = pneg %p128
        $region26: #{tpu_custom_call.1} parent=11 // pred_check_branch
          %232 = sbr.rel (%p230) target = $region28
        $region27: #{tpu_custom_call.1} parent=11 // pred_region
          _
        $region28: #{tpu_custom_call.1} parent=11 // pred_fallthru
          _
        // Predicated region
        $region29: #{tpu_custom_call.1} parent=11 // pred_check
          %p233 = pneg %p149
        $region30: #{tpu_custom_call.1} parent=11 // pred_check_branch
          %235 = sbr.rel (%p233) target = $region32
        $region31: #{tpu_custom_call.1} parent=11 // pred_region
          _
        $region32: #{tpu_custom_call.1} parent=11 // pred_fallthru
          _
        // Predicated region
        $region33: #{tpu_custom_call.1} parent=11 // pred_check
          %p236 = pneg %p170
        $region34: #{tpu_custom_call.1} parent=11 // pred_check_branch
          %238 = sbr.rel (%p236) target = $region36
        $region35: #{tpu_custom_call.1} parent=11 // pred_region
          %s240 = ssub.s32 16, 16
          %241 = vsyncadd [#allocation7], %s240
          %s243 = sshll.u32 %s6, 4
          %s244 = int_to_ptr.vmem [resolvable:$true] %s243
          %246 = dma.vmem_to_smem %s244, 16, [#allocation8], [#allocation7]
        $region36: #{tpu_custom_call.1} parent=11 // pred_fallthru
          _
      $region12: #{tpu_custom_call.1} parent=5 // pred_fallthru
        _
      %p247 = scmp.lt.s32.totalorder %s18, 2
      // Predicated region
      $region37: #{tpu_custom_call.1} parent=5 // pred_check
        %p248 = pneg %p247
      $region38: #{tpu_custom_call.1} parent=5 // pred_check_branch
        %250 = sbr.rel (%p248) target = $region40
      $region39: #{tpu_custom_call.1} parent=5 // pred_region
        // Predicated region
        $region41: #{tpu_custom_call.1} parent=39 // pred_check
          %p251 = pneg %p38
        $region42: #{tpu_custom_call.1} parent=39 // pred_check_branch
          %253 = sbr.rel (%p251) target = $region44
        $region43: #{tpu_custom_call.1} parent=39 // pred_region
          %p254 = scmp.lt.s32.totalorder %s18, 1
          %s255 = scalar_select %p254, %s18, 1
          %s256 = smul.addr %s255, 2
          %s257 = smul.addr %s256, 8
          %s258 = scalar_lea.vmem %s0, %s257
        $region44: #{tpu_custom_call.1} parent=39 // pred_fallthru
          _
      $region40: #{tpu_custom_call.1} parent=5 // pred_fallthru
        _
      %p259 = scmp.le.s32.totalorder 1, %s18
      %p260 = scmp.lt.s32.totalorder %s18, 3
      %p261 = pnand %p259, %p260
      %p262 = pneg %p261
      // Predicated region
      $region45: #{tpu_custom_call.1} parent=5 // pred_check
        _
      $region46: #{tpu_custom_call.1} parent=5 // pred_check_branch
        %264 = sbr.rel (%p261) target = $region48
      $region47: #{tpu_custom_call.1} parent=5 // pred_region
        %s265 = ssub.s32 %s18, 1
        // Predicated region
        $region49: #{tpu_custom_call.1} parent=47 // pred_check
          %p266 = pneg %p107
        $region50: #{tpu_custom_call.1} parent=47 // pred_check_branch
          %268 = sbr.rel (%p266) target = $region52
        $region51: #{tpu_custom_call.1} parent=47 // pred_region
          %269 = dma.done [#allocation5], 256
        $region52: #{tpu_custom_call.1} parent=47 // pred_fallthru
          _
        // Predicated region
        $region53: #{tpu_custom_call.1} parent=47 // pred_check
          %p270 = pneg %p170
        $region54: #{tpu_custom_call.1} parent=47 // pred_check_branch
          %272 = sbr.rel (%p270) target = $region56
        $region55: #{tpu_custom_call.1} parent=47 // pred_region
          %273 = dma.done [#allocation7], 16
        $region56: #{tpu_custom_call.1} parent=47 // pred_fallthru
          _
        %274 = sfence
        %p275 = scmp.lt.s32.totalorder %s23, 1
        %s276 = scalar_select %p275, %s23, 1
        %s277 = smul.addr %s276, 2
        %s278 = smul.addr %s277, 8
        %s279 = scalar_lea.vmem %s0, %s278
        %p280 = pneg %p44
        %p281 = pneg %p41
        %p282 = pneg %p65
        %p283 = pneg %p62
        %p284 = pneg %p86
        %p285 = pneg %p83
        %p286 = pneg %p107
        %p287 = pneg %p104
        %p288 = pneg %p128
        %p289 = pneg %p125
        %p290 = pneg %p149
        %p291 = pneg %p146
        %p292 = pneg %p170
        %p293 = pneg %p167
        %p294 = pneg %p196
        %p295 = pneg %p193
        %s296 = sand.u32 %s183, 1
        %s297 = scalar_lea.sflag [#allocation6], %s296
        %s298 = sand.u32 %s183, 1
        %s299 = smul.addr %s298, 16
        %s300 = scalar_lea.vmem [#allocation9], %s299
        %p301 = scmp.lt.s32.totalorder %s23, 1
        %s302 = scalar_select %p301, %s23, 1
        %s303 = smul.addr %s302, 2
        %s304 = smul.addr %s303, 8
        %s305 = scalar_lea.vmem %s0, %s304
        %v306 = vld [vmem:[%s305] sm:$0xff]
        %v307 = vld [vmem:[%s305 + $0x8] sm:$0xff]
        %v308 = vld [vmem:[%s1] sm:$0xf]
        %v309 = vld [vmem:[%s2] sm:$0xf]
        %311 = vset.pattern.permute.xlu0 0
        %312 = vperm.xlu0 %311, %v309
        %v313 = vpop.permute.xlu0 %312
        %vm315 = vcmask 130048
        %v317 = vsel %vm315, %v308, 0
        %319 = vmatprep.subr.mxu0 0.0
        %320 = vmatpush1.msra.mxu0 0.0
        %321 = vmatprep.subr.mxu0 0.0
        %322 = vmatpush1.msra.mxu0 0.0
        %323 = vmatprep.subr.mxu0 0.0
        %324 = vmatpush1.msra.mxu0 0.0
        %325 = vmatprep.subr.mxu0 0.0
        %326 = vmatpush1.msra.mxu0 0.0
        %327 = vmatprep.subr.mxu0 0.0
        %328 = vmatpush1.msra.mxu0 0.0
        %329 = vmatprep.subr.mxu0 0.0
        %330 = vmatpush1.msra.mxu0 0.0
        %331 = vmatprep.subr.mxu0 0.0
        %332 = vmatpush1.msra.mxu0 0.0
        %333 = vmatprep.subr.mxu0 0.0
        %334 = vmatpush1.msra.mxu0 0.0
        %335 = vmatprep.subr.mxu0 0.0
        %336 = vmatpush1.msra.mxu0 0.0
        %337 = vmatprep.subr.mxu0 0.0
        %338 = vmatpush1.msra.mxu0 0.0
        %339 = vmatprep.subr.mxu0 0.0
        %340 = vmatpush1.msra.mxu0 0.0
        %341 = vmatprep.subr.mxu0 0.0
        %342 = vmatpush1.msra.mxu0 0.0
        %343 = vmatprep.subr.mxu0 0.0
        %344 = vmatpush1.msra.mxu0 0.0
        %345 = vmatprep.subr.mxu0 0.0
        %346 = vmatpush1.msra.mxu0 0.0
        %347 = vmatprep.subr.mxu0 0.0
        %348 = vmatpush1.msra.mxu0 %v307
        %349 = vmatprep.subr.mxu0 0.0
        %350 = vmatpush1.msra.mxu0 %v306
        %351 = vmatprep.subr.mxu0 0.0
        %352 = vmatpush2.msra.mxu0 0.0
        %353 = vmatprep.subr.mxu0 0.0
        %354 = vmatpush2.msra.mxu0 0.0
        %355 = vmatprep.subr.mxu0 0.0
        %356 = vmatpush2.msra.mxu0 0.0
        %357 = vmatprep.subr.mxu0 0.0
        %358 = vmatpush2.msra.mxu0 0.0
        %359 = vmatprep.subr.mxu0 0.0
        %360 = vmatpush2.msra.mxu0 0.0
        %361 = vmatprep.subr.mxu0 0.0
        %362 = vmatpush2.msra.mxu0 0.0
        %363 = vmatprep.subr.mxu0 0.0
        %364 = vmatpush2.msra.mxu0 0.0
        %365 = vmatprep.subr.mxu0 0.0
        %366 = vmatpush2.msra.mxu0 0.0
        %367 = vmatprep.subr.mxu0 0.0
        %368 = vmatpush2.msra.mxu0 0.0
        %369 = vmatprep.subr.mxu0 0.0
        %370 = vmatpush2.msra.mxu0 0.0
        %371 = vmatprep.subr.mxu0 0.0
        %372 = vmatpush2.msra.mxu0 0.0
        %373 = vmatprep.subr.mxu0 0.0
        %374 = vmatpush2.msra.mxu0 0.0
        %375 = vmatprep.subr.mxu0 0.0
        %376 = vmatpush2.msra.mxu0 0.0
        %377 = vmatprep.subr.mxu0 0.0
        %378 = vmatpush2.msra.mxu0 0.0
        %379 = vmatprep.subr.mxu0 0.0
        %380 = vmatpush2.msra.mxu0 0.0
        %381 = vmatprep.subr.mxu0 0.0
        %382 = vmatpush2.msra.mxu0 0.0
        %383 = vmatprep.mubr.f32.mxu0 0.0
        %384 = vmatmul.mubr.f32.gmra.mxu0 %v317
        %v385 = vpop.f32.mrf.mxu0
        %v386 = vadd.f32 %v313, %v385
        %v387 = vpop.f32.mrf.mxu0
        %388 = vdwg.mxu0
        %s389 = sld [smem:[#allocation8]]
        %vm390 = vcmp.gt.f32.partialorder %v386, 0.0
        %v391 = vstv %s389
        %v392 = vmul.f32 %v391, %v386
        %v393 = vsel %vm390, %v386, %v392
        %vm394 = vcmask 60416
        %395 = vst.msk [vmem:[#allocation2] sm:$0xf] %vm394, 0.0
        %vm396 = vcmask 126016
        %397 = vst.msk [vmem:[#allocation2 + $0x4] sm:$0xf] %vm396, 0.0
        %399 = vrot.lane.b32.xlu0 %v393, 8
        %v400 = vpop.permute.xlu0 %399
        %v401 = vrot.slane %v400, 4
        %vm402 = vcmask 64512
        %v403 = vsel %vm402, %v401, %v400
        %vm405 = vcmask 1043520
        %vm406 = vcmask 64516
        %vm407 = vmor %vm406, %vm405
        %408 = vst.msk [vmem:[#allocation2] sm:$0xff] %vm407, %v403
        %v409 = vld [vmem:[#allocation2] sm:$0xf]
        %410 = vst [vmem:[#allocation3] sm:$0xf] %v409
        %v411 = vld [vmem:[#allocation2] sm:$0xff]
        %v413 = vcombine.high %v411, %v411
        %414 = vrot.lane.b32.xlu0 %v411, 124
        %v415 = vpop.permute.xlu0 %414
        %416 = vrot.lane.b32.xlu0 %v413, 124
        %v417 = vpop.permute.xlu0 %416
        %vm418 = vcmask 1014784
        %v419 = vsel %vm418, %v415, %v417
        %421 = vst [vmem:[#allocation3 + $0x4] sm:$0xf] %v419
        %v422 = vld [vmem:[#allocation2] sm:$0xff]
        %v424 = vcombine.high %v422, %v422
        %425 = vrot.lane.b32.xlu0 %v422, 122
        %v426 = vpop.permute.xlu0 %425
        %427 = vrot.lane.b32.xlu0 %v424, 122
        %v428 = vpop.permute.xlu0 %427
        %vm429 = vcmask 998400
        %v430 = vsel %vm429, %v426, %v428
        %432 = vst [vmem:[#allocation3 + $0x8] sm:$0xf] %v430
        %v433 = vld [vmem:[#allocation2] sm:$0xff]
        %v435 = vcombine.high %v433, %v433
        %436 = vrot.lane.b32.xlu0 %v433, 121
        %v437 = vpop.permute.xlu0 %436
        %438 = vrot.lane.b32.xlu0 %v435, 121
        %v439 = vpop.permute.xlu0 %438
        %vm440 = vcmask 990208
        %v441 = vsel %vm440, %v437, %v439
        %443 = vst [vmem:[#allocation3 + $0xc] sm:$0xf] %v441
        %444 = vst [vmem:[#allocation3 + $0x10] sm:$0xf] %v393
        %v445 = vld [vmem:[#allocation2] sm:$0xff]
        %v447 = vcombine.high %v445, %v445
        %448 = vrot.lane.b32.xlu0 %v445, 119
        %v449 = vpop.permute.xlu0 %448
        %450 = vrot.lane.b32.xlu0 %v447, 119
        %v451 = vpop.permute.xlu0 %450
        %vm452 = vcmask 973824
        %v453 = vsel %vm452, %v449, %v451
        %455 = vst [vmem:[#allocation3 + $0x14] sm:$0xf] %v453
        %v456 = vld [vmem:[#allocation2] sm:$0xff]
        %v458 = vcombine.high %v456, %v456
        %459 = vrot.lane.b32.xlu0 %v456, 118
        %v460 = vpop.permute.xlu0 %459
        %461 = vrot.lane.b32.xlu0 %v458, 118
        %v462 = vpop.permute.xlu0 %461
        %vm463 = vcmask 965632
        %v464 = vsel %vm463, %v460, %v462
        %466 = vst [vmem:[#allocation3 + $0x18] sm:$0xf] %v464
        %v467 = vld [vmem:[#allocation2] sm:$0xff]
        %v469 = vcombine.high %v467, %v467
        %470 = vrot.lane.b32.xlu0 %v467, 116
        %v471 = vpop.permute.xlu0 %470
        %472 = vrot.lane.b32.xlu0 %v469, 116
        %v473 = vpop.permute.xlu0 %472
        %vm474 = vcmask 949248
        %v475 = vsel %vm474, %v471, %v473
        %477 = vst [vmem:[#allocation3 + $0x1c] sm:$0xf] %v475
        %v478 = vld [vmem:[#allocation2] sm:$0xff]
        %v480 = vcombine.high %v478, %v478
        %481 = vrot.lane.b32.xlu0 %v478, 112
        %v482 = vpop.permute.xlu0 %481
        %483 = vrot.lane.b32.xlu0 %v480, 112
        %v484 = vpop.permute.xlu0 %483
        %vm485 = vcmask 916480
        %v486 = vsel %vm485, %v482, %v484
        %488 = vst [vmem:[#allocation3 + $0x20] sm:$0xf] %v486
        %v489 = vld [vmem:[#allocation4] sm:$0xff]
        %v490 = vld [vmem:[#allocation4 + $0x8] sm:$0xff]
        %v491 = vld [vmem:[#allocation3] sm:$0xff]
        %v492 = vld [vmem:[#allocation3 + $0x8] sm:$0xff]
        %v493 = vld [vmem:[#allocation3 + $0x10] sm:$0xff]
        %v494 = vld [vmem:[#allocation3 + $0x18] sm:$0xff]
        %v495 = vld [vmem:[#allocation3 + $0x20] sm:$0xf]
        %v496 = vld [vmem:[%s4] sm:$0xff]
        %v497 = vld [vmem:[%s4 + $0x8] sm:$0xff]
        %499 = vset.pattern.permute.xlu0 0
        %500 = vperm.xlu0 %499, %v496
        %v501 = vpop.permute.xlu0 %500
        %504 = vset.pattern.permute.xlu0 0
        %505 = vperm.xlu0 %504, %v497
        %v506 = vpop.permute.xlu0 %505
        %v508 = vmul.f32 %v501, %v306
        %v509 = vmul.f32 %v506, %v307
        %vm510 = vcmask 293888
        %v512 = vsel %vm510, %v489, 0
        %v515 = vsel %vm510, %v490, 0
        %vm517 = vcmask 1043456
        %v519 = vsel %vm517, %v495, 0
        %521 = vmatprep.subr.mxu0 0.0
        %522 = vmatpush1.msra.mxu0 0.0
        %523 = vmatprep.subr.mxu0 0.0
        %524 = vmatpush1.msra.mxu0 0.0
        %525 = vmatprep.subr.mxu0 0.0
        %526 = vmatpush1.msra.mxu0 0.0
        %527 = vmatprep.subr.mxu0 0.0
        %528 = vmatpush1.msra.mxu0 0.0
        %529 = vmatprep.subr.mxu0 0.0
        %530 = vmatpush1.msra.mxu0 0.0
        %531 = vmatprep.subr.mxu0 0.0
        %532 = vmatpush1.msra.mxu0 0.0
        %533 = vmatprep.subr.mxu0 0.0
        %534 = vmatpush1.msra.mxu0 0.0
        %535 = vmatprep.subr.mxu0 0.0
        %536 = vmatpush1.msra.mxu0 0.0
        %537 = vmatprep.subr.mxu0 0.0
        %538 = vmatpush1.msra.mxu0 0.0
        %539 = vmatprep.subr.mxu0 0.0
        %540 = vmatpush1.msra.mxu0 0.0
        %541 = vmatprep.subr.mxu0 0.0
        %542 = vmatpush1.msra.mxu0 0.0
        %543 = vmatprep.subr.mxu0 0.0
        %544 = vmatpush1.msra.mxu0 %v519
        %545 = vmatprep.subr.mxu0 0.0
        %546 = vmatpush1.msra.mxu0 %v494
        %547 = vmatprep.subr.mxu0 0.0
        %548 = vmatpush1.msra.mxu0 %v493
        %549 = vmatprep.subr.mxu0 0.0
        %550 = vmatpush1.msra.mxu0 %v492
        %551 = vmatprep.subr.mxu0 0.0
        %552 = vmatpush1.msra.mxu0 %v491
        %553 = vmatprep.subr.mxu0 0.0
        %554 = vmatpush2.msra.mxu0 0.0
        %555 = vmatprep.subr.mxu0 0.0
        %556 = vmatpush2.msra.mxu0 0.0
        %557 = vmatprep.subr.mxu0 0.0
        %558 = vmatpush2.msra.mxu0 0.0
        %559 = vmatprep.subr.mxu0 0.0
        %560 = vmatpush2.msra.mxu0 0.0
        %561 = vmatprep.subr.mxu0 0.0
        %562 = vmatpush2.msra.mxu0 0.0
        %563 = vmatprep.subr.mxu0 0.0
        %564 = vmatpush2.msra.mxu0 0.0
        %565 = vmatprep.subr.mxu0 0.0
        %566 = vmatpush2.msra.mxu0 0.0
        %567 = vmatprep.subr.mxu0 0.0
        %568 = vmatpush2.msra.mxu0 0.0
        %569 = vmatprep.subr.mxu0 0.0
        %570 = vmatpush2.msra.mxu0 0.0
        %571 = vmatprep.subr.mxu0 0.0
        %572 = vmatpush2.msra.mxu0 0.0
        %573 = vmatprep.subr.mxu0 0.0
        %574 = vmatpush2.msra.mxu0 0.0
        %575 = vmatprep.subr.mxu0 0.0
        %576 = vmatpush2.msra.mxu0 0.0
        %577 = vmatprep.subr.mxu0 0.0
        %578 = vmatpush2.msra.mxu0 0.0
        %579 = vmatprep.subr.mxu0 0.0
        %580 = vmatpush2.msra.mxu0 0.0
        %581 = vmatprep.subr.mxu0 0.0
        %582 = vmatpush2.msra.mxu0 0.0
        %583 = vmatprep.subr.mxu0 0.0
        %584 = vmatpush2.msra.mxu0 0.0
        %585 = vmatprep.mubr.f32.mxu0 0.0
        %586 = vmatmul.mubr.f32.gmra.mxu0 %v512
        %v587 = vpop.f32.mrf.mxu0
        %v588 = vadd.f32 %v508, %v587
        %v589 = vpop.f32.mrf.mxu0
        %590 = vmatprep.mubr.f32.mxu0 0.0
        %591 = vmatmul.mubr.f32.gmra.mxu0 %v515
        %v592 = vpop.f32.mrf.mxu0
        %v593 = vadd.f32 %v509, %v592
        %v594 = vpop.f32.mrf.mxu0
        %595 = vdwg.mxu0
        %v596 = vld [vmem:[%s5] sm:$0xff]
        %v597 = vld [vmem:[%s5 + $0x8] sm:$0xff]
        %599 = vset.pattern.permute.xlu0 0
        %600 = vperm.xlu0 %599, %v596
        %v601 = vpop.permute.xlu0 %600
        %604 = vset.pattern.permute.xlu0 0
        %605 = vperm.xlu0 %604, %v597
        %v606 = vpop.permute.xlu0 %605
        %v608 = vadd.f32 %v588, %v601
        %v609 = vadd.f32 %v593, %v606
        %s610 = sld [smem:[#allocation8 + $0x1]]
        %vm611 = vcmp.gt.f32.partialorder %v608, 0.0
        %vm612 = vcmp.gt.f32.partialorder %v609, 0.0
        %v613 = vstv %s610
        %v614 = vmul.f32 %v613, %v608
        %v615 = vmul.f32 %v613, %v609
        %v616 = vsel %vm611, %v608, %v614
        %v617 = vsel %vm612, %v609, %v615
        %618 = vst [vmem:[%s300] sm:$0xff] %v616
        %619 = vst [vmem:[%s300 + $0x8] sm:$0xff] %v617
        %s620 = sand.u32 %s183, 1
        %s621 = scalar_lea.sflag [#allocation6], %s620
        %s622 = sand.u32 %s183, 1
        %s623 = smul.addr %s622, 16
        %s624 = scalar_lea.vmem [#allocation9], %s623
        // Predicated region
        $region57: #{tpu_custom_call.1} parent=47 // pred_check
          %p625 = pneg %p193
        $region58: #{tpu_custom_call.1} parent=47 // pred_check_branch
          %627 = sbr.rel (%p625) target = $region60
        $region59: #{tpu_custom_call.1} parent=47 // pred_region
          %s629 = ssub.s32 256, 256
          %630 = vsyncadd %s621, %s629
          %s631 = smul.addr %s23, 2
          %s632 = smul.addr %s631, 128
          %s633 = scalar_lea.hbm %s7, %s632
          %s634 = sshll.u32 %s624, 4
          %s635 = int_to_ptr.vmem [resolvable:$true] %s634
          %640 = dma.vmem_to_hbm [thread:$0]  %s635, 256, %s633, %s621, 128, 128, 8
        $region60: #{tpu_custom_call.1} parent=47 // pred_fallthru
          _
      $region48: #{tpu_custom_call.1} parent=5 // pred_fallthru
        _
      %p641 = scmp.le.s32.totalorder 2, %s18
      // Predicated region
      $region61: #{tpu_custom_call.1} parent=5 // pred_check
        %p642 = pneg %p641
      $region62: #{tpu_custom_call.1} parent=5 // pred_check_branch
        %644 = sbr.rel (%p642) target = $region64
      $region63: #{tpu_custom_call.1} parent=5 // pred_region
        %s645 = ssub.s32 %s18, 2
        // Predicated region
        $region65: #{tpu_custom_call.1} parent=63 // pred_check
          %p646 = pneg %p199
        $region66: #{tpu_custom_call.1} parent=63 // pred_check_branch
          %648 = sbr.rel (%p646) target = $region68
        $region67: #{tpu_custom_call.1} parent=63 // pred_region
          %s649 = sand.u32 %s184, 1
          %s650 = scalar_lea.sflag [#allocation6], %s649
          %s651 = sand.u32 %s184, 1
          %s652 = smul.addr %s651, 16
          %s653 = scalar_lea.vmem [#allocation9], %s652
          %654 = dma.done %s650, 256
        $region68: #{tpu_custom_call.1} parent=63 // pred_fallthru
          _
      $region64: #{tpu_custom_call.1} parent=5 // pred_fallthru
        _
    $region6: #{tpu_custom_call.1} parent=1 // loop_footer
      %s22 = sadd.s32 1, %s18
    $region7: #{tpu_custom_call.1} parent=1 // loop_footer_branch
      %17 = sbr.rel target = $region3
    $region8: #{tpu_custom_call.1} parent=1 // loop_exit
      _
    %655 = vsyncpa [#allocation5], 1
    %s656 = scalar_lea.sflag [#allocation5], 1
    %657 = vsyncpa %s656, 1
    %658 = vsyncpa [#allocation6], 1
    %s659 = scalar_lea.sflag [#allocation6], 1
    %660 = vsyncpa %s659, 1
    %661 = vsyncpa [#allocation7], 1
    %s662 = scalar_lea.sflag [#allocation7], 1
    %663 = vsyncpa %s662, 1

</llo_original>
